<compile_context>
chip_gen: v7x
topology: tpu7x:2x2x1
jax: 0.10.0
libtpu: 0.0.40
codegen_flags: <defaults>
</compile_context>

<pallas_src>
import jax
import jax.numpy as jnp
from jax.experimental import pallas as pl
from jax.experimental.pallas import tpu as pltpu


# ----------------------------------------------------------------------------
# Kernels
# ----------------------------------------------------------------------------
def _ffn_kernel_acc(x_ref, w1_ref, w3_ref, w2_ref, o_ref, acc_ref):
    """Streaming d_ff reduction with a separate f32 accumulator scratch.

    x_ref:  (tm, d_model)   bf16 row tile of tokens
    w1_ref: (d_model, tf)   bf16 W1 slab for d_ff slab k
    w3_ref: (d_model, tf)   bf16 W3 slab for d_ff slab k
    w2_ref: (tf, d_model)   bf16 matching W2 reduction slab
    o_ref:  (tm, d_model)   output tile (resident across the k axis)
    acc_ref:(tm, d_model)   f32 accumulator scratch
    """
    k = pl.program_id(1)

    @pl.when(k == 0)
    def _():
        acc_ref[...] = jnp.zeros_like(acc_ref)

    x = x_ref[...]
    h = jnp.dot(x, w1_ref[...], preferred_element_type=jnp.float32)
    g = jnp.dot(x, w3_ref[...], preferred_element_type=jnp.float32)
    # SiLU(h) * g in f32 (VPU/EUP); single downcast feeding the second matmul.
    inner = (h * jax.nn.sigmoid(h)) * g
    acc_ref[...] += jnp.dot(inner.astype(w2_ref.dtype), w2_ref[...],
                            preferred_element_type=jnp.float32)

    @pl.when(k == pl.num_programs(1) - 1)
    def _():
        o_ref[...] = acc_ref[...].astype(o_ref.dtype)


def _ffn_kernel_f32out(x_ref, w1_ref, w3_ref, w2_ref, o_ref):
    """f32-output variant: accumulate straight into the resident output tile."""
    k = pl.program_id(1)

    @pl.when(k == 0)
    def _():
        o_ref[...] = jnp.zeros_like(o_ref)

    x = x_ref[...]
    h = jnp.dot(x, w1_ref[...], preferred_element_type=jnp.float32)
    g = jnp.dot(x, w3_ref[...], preferred_element_type=jnp.float32)
    inner = (h * jax.nn.sigmoid(h)) * g
    o_ref[...] += jnp.dot(inner.astype(w2_ref.dtype), w2_ref[...],
                          preferred_element_type=jnp.float32)


# ----------------------------------------------------------------------------
# Generation-aware tuning helpers
# ----------------------------------------------------------------------------
def _tpu_generation():
    try:
        kind = jax.devices()[0].device_kind.lower()
    except Exception:
        return "unknown"
    if "v5 lite" in kind or "v5e" in kind or "v5litepod" in kind:
        return "v5e"
    if "v6" in kind:
        return "v6e"
    if "v7" in kind:
        return "v7x"
    return "unknown"


def _vmem_capacity_bytes():
    try:
        return int(pltpu.get_tpu_info().vmem_capacity_bytes)
    except Exception:
        return 64 * 1024 * 1024  # conservative (v7x-sized) fallback


# Row-tile target near each generation's weight-streaming roofline crossover
# (weights are re-streamed once per M tile, so intensity ~ tm FLOPs/byte).
_TM_TARGET = {"v5e": 512, "v6e": 768, "v7x": 512, "unknown": 512}


def _pick_dff_tile(d_ff):
    for tf in (256, 128):          # 256 keeps the 2nd matmul's K MXU-wide
        if d_ff % tf == 0:
            return tf
    return d_ff                    # single full slab stays lane-aligned


def _vmem_usage(tm, tf, d_model, wsz, xsz, osz, separate_acc):
    b = 2 * tm * d_model * xsz           # x tiles (double-buffered)
    b += 2 * 3 * d_model * tf * wsz      # W1 / W3 / W2 slabs (double-buffered)
    b += 2 * tm * d_model * osz          # output tiles (double-buffered)
    if separate_acc:
        b += tm * d_model * 4            # f32 accumulator scratch
    b += 4 * tm * tf * 4                 # h / g / inner f32 intermediates
    return b


# ----------------------------------------------------------------------------
# Wrapper
# ----------------------------------------------------------------------------
def ffn_pallas(x, w1, w3, w2, *, tm=None, tf=None,
               compute_dtype=jnp.bfloat16, out_dtype=None):
    """SwiGLU FFN. x: [..., d_model]; w1,w3: [d_model, d_ff]; w2: [d_ff, d_model].

    Weights are consumed in their natural layout; pre-cast them to
    `compute_dtype` once at init to avoid any per-call weight traffic beyond
    the kernel's own streaming DMA.
    """
    orig_shape = x.shape
    d_model = x.shape[-1]
    d_ff = w1.shape[1]
    assert w1.shape == (d_model, d_ff)
    assert w3.shape == (d_model, d_ff)
    assert w2.shape == (d_ff, d_model)

    out_dtype = jnp.dtype(x.dtype if out_dtype is None else out_dtype)
    separate_acc = out_dtype != jnp.dtype(jnp.float32)

    x2d = x.reshape(-1, d_model)
    m = x2d.shape[0]

    wsz = jnp.dtype(compute_dtype).itemsize
    xsz = jnp.dtype(compute_dtype).itemsize
    osz = out_dtype.itemsize

    gen = _tpu_generation()
    capacity = _vmem_capacity_bytes()
    budget = int(capacity * 0.8)          # leave compiler-scratch headroom

    # --- d_ff slab selection -------------------------------------------------
    if tf is None:
        tf = _pick_dff_tile(d_ff)
    assert d_ff % tf == 0, "d_ff must be divisible by the d_ff slab size"
    assert tf % 128 == 0 or tf == d_ff, "d_ff slab must be lane-aligned"
    nk = d_ff // tf

    # --- row-tile selection --------------------------------------------------
    if tm is None:
        tm = _TM_TARGET[gen]
        m128 = pl.cdiv(m, 128) * 128
        tm = min(tm, m128)
        # Megacore (v7x): keep both TensorCores busy when there is enough work.
        if gen == "v7x" and m128 >= 256 and pl.cdiv(m128, tm) < 2:
            tm = pl.cdiv(m128 // 2, 128) * 128
        # Shrink until the pipelined tile set fits the VMEM budget.
        if (tf > 128 and d_ff % 128 == 0
                and _vmem_usage(128, tf, d_model, wsz, xsz, osz,
                                separate_acc) > budget):
            tf, nk = 128, d_ff // 128
        while tm > 128 and _vmem_usage(tm, tf, d_model, wsz, xsz, osz,
                                       separate_acc) > budget:
            tm -= 128
    assert tm % 8 == 0, "row tile must stay sublane-aligned"

    # Flatten tokens and pad to a multiple of the row tile (padded rows are
    # zeros -> SiLU(0)*0 = 0 -> they contribute nothing and are sliced off).
    m_pad = pl.cdiv(m, tm) * tm
    if m_pad != m:
        x2d = jnp.pad(x2d, ((0, m_pad - m), (0, 0)))
    grid_m = m_pad // tm

    est = _vmem_usage(tm, tf, d_model, wsz, xsz, osz, separate_acc)
    vmem_limit = max(32 * 1024 * 1024, int(est * 3 // 2))
    vmem_limit = int(min(vmem_limit, int(capacity * 0.85)))

    # bf16 operands for the MXU (no-op if already pre-cast at init time).
    xb = x2d.astype(compute_dtype)
    w1c = w1.astype(compute_dtype)
    w3c = w3.astype(compute_dtype)
    w2c = w2.astype(compute_dtype)

    kernel = _ffn_kernel_acc if separate_acc else _ffn_kernel_f32out
    scratch = ([pltpu.VMEM((tm, d_model), jnp.float32)] if separate_acc else [])

    out = pl.pallas_call(
        kernel,
        out_shape=jax.ShapeDtypeStruct((m_pad, d_model), out_dtype),
        grid_spec=pltpu.PrefetchScalarGridSpec(
            num_scalar_prefetch=0,
            grid=(grid_m, nk),                    # M parallel, d_ff reduction last
            in_specs=[
                pl.BlockSpec((tm, d_model), lambda i, k: (i, 0)),   # x rows
                pl.BlockSpec((d_model, tf), lambda i, k: (0, k)),   # W1 slab
                pl.BlockSpec((d_model, tf), lambda i, k: (0, k)),   # W3 slab
                pl.BlockSpec((tf, d_model), lambda i, k: (k, 0)),   # W2 slab
            ],
            out_specs=pl.BlockSpec((tm, d_model), lambda i, k: (i, 0)),
            scratch_shapes=scratch,
        ),
        compiler_params=pltpu.CompilerParams(
            dimension_semantics=("parallel", "arbitrary"),
            vmem_limit_bytes=vmem_limit,
        ),
    )(xb, w1c, w3c, w2c)

    if m_pad != m:
        out = out[:m]
    return out.reshape(orig_shape)


def ffn_reference(x, w1, w3, w2, compute_dtype=jnp.bfloat16):
    # Same dtype flow as the kernel (bf16 matmuls, f32 accumulation/elementwise).
    xb = x.astype(compute_dtype)
    h = jnp.dot(xb, w1.astype(compute_dtype), preferred_element_type=jnp.float32)
    g = jnp.dot(xb, w3.astype(compute_dtype), preferred_element_type=jnp.float32)
    inner = (h * jax.nn.sigmoid(h)) * g
    out = jnp.dot(inner.astype(compute_dtype), w2.astype(compute_dtype),
                  preferred_element_type=jnp.float32)
    return out.astype(jnp.float32)


if __name__ == "__main__":
    # Small shapes consistent with the module: FFN(d_model=128, d_ff=512).
    batch, seq, d_model, d_ff = 2, 8, 128, 512

    key = jax.random.PRNGKey(0)
    kx, k1, k2, k3 = jax.random.split(key, 4)

    x = jax.random.normal(kx, (batch, seq, d_model), dtype=jnp.float32)
    # Deterministic synthetic weights (stored [in, out] == nn.Linear W.T).
    w1 = jax.random.normal(k1, (d_model, d_ff), jnp.float32) * (d_model ** -0.5)
    w3 = jax.random.normal(k3, (d_model, d_ff), jnp.float32) * (d_model ** -0.5)
    w2 = jax.random.normal(k2, (d_ff, d_model), jnp.float32) * (d_ff ** -0.5)

    # Init-time weight prep (done ONCE, outside the per-call path): cast the
    # stored f32 Linear weights to bf16 so kernel calls involve no repack/cast.
    w1b, w3b, w2b = (w.astype(jnp.bfloat16) for w in (w1, w3, w2))

    ref = ffn_reference(x, w1, w3, w2)

    # Path 1: f32 activations / f32 output -> accumulates in the output tile.
    out = jax.block_until_ready(ffn_pallas(x, w1b, w3b, w2b))
    assert out.shape == (batch, seq, d_model) and out.dtype == x.dtype
    err = float(jnp.max(jnp.abs(out - ref)))
    assert jnp.allclose(out, ref, atol=2e-2, rtol=2e-2), \
        f"f32 path mismatch vs reference (max abs err {err})"

    # Path 2: bf16 activations / bf16 output -> separate f32 accumulator path.
    xb = x.astype(jnp.bfloat16)
    outb = jax.block_until_ready(ffn_pallas(xb, w1b, w3b, w2b))
    assert outb.shape == (batch, seq, d_model) and outb.dtype == jnp.bfloat16
    errb = float(jnp.max(jnp.abs(outb.astype(jnp.float32) - ref)))
    assert errb < 1.5e-1, f"bf16 path mismatch vs reference (max abs err {errb})"

    print("KERNEL_OK")
</pallas_src>

<mosaic_0001>
module attributes {stable_mosaic.version = 11 : i64} {
  func.func @_ffn_kernel_f32out(%arg0: i32, %arg1: i32, %arg2: memref<128x128xbf16, #tpu.memory_space<vmem>>, %arg3: memref<128x256xbf16, #tpu.memory_space<vmem>>, %arg4: memref<128x256xbf16, #tpu.memory_space<vmem>>, %arg5: memref<256x128xbf16, #tpu.memory_space<vmem>>, %arg6: memref<128x128xf32, #tpu.memory_space<vmem>>) attributes {dimension_semantics = [#tpu.dimension_semantics<parallel>, #tpu.dimension_semantics<arbitrary>], iteration_bounds = array<i64: 1, 2>, scalar_prefetch = 0 : i64, scratch_operands = 0 : i64, tpu.core_type = #tpu.core_type<tc>, window_params = [{transform_indices = @transform_0, window_bounds = array<i64: 128, 128>}, {transform_indices = @transform_1, window_bounds = array<i64: 128, 256>}, {transform_indices = @transform_2, window_bounds = array<i64: 128, 256>}, {transform_indices = @transform_3, window_bounds = array<i64: 256, 128>}, {transform_indices = @transform_4, window_bounds = array<i64: 128, 128>}]} {
    %c0_i32 = arith.constant 0 : i32
    %0 = arith.cmpi eq, %arg1, %c0_i32 : i32
    %1 = arith.extui %0 : i1 to i32
    %c0_i32_0 = arith.constant 0 : i32
    %2 = arith.cmpi ne, %1, %c0_i32_0 : i32
    scf.if %2 {
      %cst_15 = arith.constant 0.000000e+00 : f32
      %21 = vector.broadcast %cst_15 : f32 to vector<128x128xf32>
      %c0_16 = arith.constant 0 : index
      %c0_17 = arith.constant 0 : index
      %22 = vector.load %arg6[%c0_16, %c0_17] : memref<128x128xf32, #tpu.memory_space<vmem>>, vector<128x128xf32>
      tpu.vector_store %arg6[%c0_16, %c0_17], %21 {strides = array<i32>} : memref<128x128xf32, #tpu.memory_space<vmem>>, vector<128x128xf32>,
    } else {
    }
    %c0 = arith.constant 0 : index
    %c0_1 = arith.constant 0 : index
    %3 = vector.load %arg2[%c0, %c0_1] : memref<128x128xbf16, #tpu.memory_space<vmem>>, vector<128x128xbf16>
    %c0_2 = arith.constant 0 : index
    %c0_3 = arith.constant 0 : index
    %4 = vector.load %arg3[%c0_2, %c0_3] : memref<128x256xbf16, #tpu.memory_space<vmem>>, vector<128x256xbf16>
    %cst = arith.constant dense<0.000000e+00> : vector<128x256xf32>
    %5 = tpu.matmul %3, %4, %cst {dimension_numbers = #tpu.dot_dimension_numbers<[1], [0], [0], [1], [0, 0, 1, 1], [], []>} : vector<128x128xbf16>, vector<128x256xbf16>, vector<128x256xf32> -> vector<128x256xf32>
    %c0_4 = arith.constant 0 : index
    %c0_5 = arith.constant 0 : index
    %6 = vector.load %arg4[%c0_4, %c0_5] : memref<128x256xbf16, #tpu.memory_space<vmem>>, vector<128x256xbf16>
    %cst_6 = arith.constant dense<0.000000e+00> : vector<128x256xf32>
    %7 = tpu.matmul %3, %6, %cst_6 {dimension_numbers = #tpu.dot_dimension_numbers<[1], [0], [0], [1], [0, 0, 1, 1], [], []>} : vector<128x128xbf16>, vector<128x256xbf16>, vector<128x256xf32> -> vector<128x256xf32>
    %8 = arith.negf %5 : vector<128x256xf32>
    %9 = math.exp %8 : vector<128x256xf32>
    %cst_7 = arith.constant 1.000000e+00 : f32
    %10 = vector.broadcast %cst_7 : f32 to vector<128x256xf32>
    %11 = arith.addf %10, %9 : vector<128x256xf32>
    %12 = arith.divf %10, %11 : vector<128x256xf32>
    %13 = arith.mulf %5, %12 : vector<128x256xf32>
    %14 = arith.mulf %13, %7 : vector<128x256xf32>
    %c0_8 = arith.constant 0 : index
    %c0_9 = arith.constant 0 : index
    %15 = vector.load %arg6[%c0_8, %c0_9] : memref<128x128xf32, #tpu.memory_space<vmem>>, vector<128x128xf32>
    %16 = arith.truncf %14 : vector<128x256xf32> to vector<128x256xbf16>
    %c0_10 = arith.constant 0 : index
    %c0_11 = arith.constant 0 : index
    %17 = vector.load %arg5[%c0_10, %c0_11] : memref<256x128xbf16, #tpu.memory_space<vmem>>, vector<256x128xbf16>
    %cst_12 = arith.constant dense<0.000000e+00> : vector<128x128xf32>
    %18 = tpu.matmul %16, %17, %cst_12 {dimension_numbers = #tpu.dot_dimension_numbers<[1], [0], [0], [1], [0, 0, 1, 1], [], []>} : vector<128x256xbf16>, vector<256x128xbf16>, vector<128x128xf32> -> vector<128x128xf32>
    %19 = arith.addf %15, %18 : vector<128x128xf32>
    %c0_13 = arith.constant 0 : index
    %c0_14 = arith.constant 0 : index
    %20 = vector.load %arg6[%c0_13, %c0_14] : memref<128x128xf32, #tpu.memory_space<vmem>>, vector<128x128xf32>
    tpu.vector_store %arg6[%c0_13, %c0_14], %19 {strides = array<i32>} : memref<128x128xf32, #tpu.memory_space<vmem>>, vector<128x128xf32>,
    return
  }
  func.func @transform_0(%arg0: i32, %arg1: i32) -> (i32, i32) {
    %c0_i32 = arith.constant 0 : i32
    %c0_i32_0 = arith.constant 0 : i32
    return %arg0, %c0_i32 : i32, i32
  }
  func.func @transform_1(%arg0: i32, %arg1: i32) -> (i32, i32) {
    %c0_i32 = arith.constant 0 : i32
    %c0_i32_0 = arith.constant 0 : i32
    return %c0_i32, %arg1 : i32, i32
  }
  func.func @transform_2(%arg0: i32, %arg1: i32) -> (i32, i32) {
    %c0_i32 = arith.constant 0 : i32
    %c0_i32_0 = arith.constant 0 : i32
    return %c0_i32, %arg1 : i32, i32
  }
  func.func @transform_3(%arg0: i32, %arg1: i32) -> (i32, i32) {
    %c0_i32 = arith.constant 0 : i32
    %c0_i32_0 = arith.constant 0 : i32
    return %arg1, %c0_i32 : i32, i32
  }
  func.func @transform_4(%arg0: i32, %arg1: i32) -> (i32, i32) {
    %c0_i32 = arith.constant 0 : i32
    %c0_i32_0 = arith.constant 0 : i32
    return %arg0, %c0_i32 : i32, i32
  }
}

</mosaic_0001>

<llo_original>
// kernel: tpu_custom_call.1
$region0: #{tpu_custom_call.1}
  #allocation0 [shape = 'u32[]', space=smem, size = 0x4, offset = 0x4, fixed_abs, tag = 'smem constant byte address 0x4 - core index']
  #allocation1 [shape = 'u32[144,128]{1,0:T(1,128)}', space=vmem, size = 0x12000, scoped, tag = 'internal scratch']
  %s0 = inlined_call_operand.hbm [shape: bf16[128,128], index: 0, kind: input, shape index: {}]
  %s1 = inlined_call_operand.hbm [shape: bf16[128,512], index: 1, kind: input, shape index: {}]
  %s2 = inlined_call_operand.hbm [shape: bf16[128,512], index: 2, kind: input, shape index: {}]
  %s3 = inlined_call_operand.hbm [shape: bf16[512,128], index: 3, kind: input, shape index: {}]
  %s4 = inlined_call_operand.hbm [shape: f32[128,128], index: 4, kind: output, shape index: {}]
  %s5 = sld [smem:[#allocation0]]
  $region69: #{tpu_custom_call.1} parent=0
    _
  %s7 = ssub.s32 1, %s5
  %s8 = scalar_select 0, %s7, %s5
  $region1: #{tpu_custom_call.1} parent=0
    #allocation2 [shape = 'u8[32768]{0}', space=vmem, size = 0x8000, scoped, tag = 'input window, operand 0, single buffered']
    #allocation3 [shape = 's32[2]{0}', space=sflag, size = 0x8, scoped, tag = 'scoped memory for tpu_custom_call.1']
    #allocation4 [shape = 's32[2]{0}', space=sflag, size = 0x8, scoped, tag = 'scoped memory for tpu_custom_call.1']
    #allocation5 [shape = 'u8[131072]{0}', space=vmem, size = 0x20000, scoped, tag = 'input window, operand 1']
    #allocation6 [shape = 's32[2]{0}', space=sflag, size = 0x8, scoped, tag = 'scoped memory for tpu_custom_call.1']
    #allocation7 [shape = 'u8[131072]{0}', space=vmem, size = 0x20000, scoped, tag = 'input window, operand 2']
    #allocation8 [shape = 'u8[131072]{0}', space=vmem, size = 0x20000, scoped, tag = 'input window, operand 3']
    #allocation9 [shape = 's32[2]{0}', space=sflag, size = 0x8, scoped, tag = 'scoped memory for tpu_custom_call.1']
    #allocation10 [shape = 'u8[65536]{0}', space=vmem, size = 0x10000, scoped, tag = 'output window, operand 0, single buffered']
    %9 = vsyncpa [#allocation3], 0
    %10 = vsyncpa [#allocation6], 0
    %s11 = scalar_lea.sflag [#allocation6], 1
    %12 = vsyncpa %s11, 0
    %13 = vsyncpa [#allocation9], 0
    %s14 = scalar_lea.sflag [#allocation9], 1
    %15 = vsyncpa %s14, 0
    %16 = vsyncpa [#allocation4], 0
    loop: start=0, step=1, limit=4
    $region2: #{tpu_custom_call.1} parent=1 // loop_pre_header
      _
    $region3: #{tpu_custom_call.1} parent=1 // loop_header
      %s18 = sphi 0, %s22
      %p19 = scmp.ge.s32.totalorder %s18, 4
      %s25 = sphi 0, %s37
      %s26 = sphi 0, %s33
      %s27 = sphi 0, %s25
      %s28 = sphi 0, %s26
      %s29 = sphi 0, %s27
      %s30 = sphi 0, %s28
      %s40 = sphi 0, %s42
      %s43 = sphi 0, %s40
      %s44 = sphi 0, %s43
      %s60 = sphi 0, %s44
      %s66 = sphi 0, %s68
      %s69 = sphi 0, %s66
      %s70 = sphi 0, %s69
      %s86 = sphi 0, %s70
      %s92 = sphi 0, %s94
      %s95 = sphi 0, %s92
      %s96 = sphi 0, %s95
      %s112 = sphi 0, %s96
      %s118 = sphi 0, %s120
      %s121 = sphi 0, %s118
      %s122 = sphi 0, %s121
      %s138 = sphi 0, %s122
      %s144 = sphi 0, %s146
      %s147 = sphi 0, %s144
      %s148 = sphi 0, %s147
      %s164 = sphi 0, %s148
    $region4: #{tpu_custom_call.1} parent=1 // loop_header_branch
      %21 = sbr.rel (%p19) target = $region8
    $region5: #{tpu_custom_call.1} parent=1 // loop_body
      %s23 = ssub.s32 %s18, 1
      %s24 = ssub.s32 %s18, 2
      %s31 = sadd.s32 1, %s26
      %p32 = scmp.ge.s32.totalorder %s31, 2
      %s33 = scalar_select %p32, 0, %s31
      %s34 = sadd.s32 1, %s25
      %s35 = scalar_select %p32, %s34, %s25
      %p36 = scmp.ge.s32.totalorder %s35, 1
      %s37 = scalar_select %p36, 0, %s35
      %s38 = ssub.s32 %s25, %s37
      %p39 = scmp.eq.s32.totalorder %s38, 0
      %s41 = sadd.s32 %s40, 1
      %s42 = scalar_select %p39, %s40, %s41
      %p45 = pneg %p39
      %p46 = scmp.eq.s32.totalorder %s18, 1
      %p47 = por %p45, %p46
      %p48 = scmp.ne.s32.totalorder %s40, %s43
      %p49 = scmp.eq.s32.totalorder %s18, 0
      %p50 = por %p48, %p49
      %p51 = scmp.ne.s32.totalorder %s40, %s43
      %p52 = scmp.eq.s32.totalorder %s23, 1
      %p53 = por %p51, %p52
      %p54 = scmp.ne.s32.totalorder %s43, %s44
      %p55 = scmp.eq.s32.totalorder %s23, 0
      %p56 = por %p54, %p55
      %p57 = scmp.ne.s32.totalorder %s43, %s44
      %p58 = scmp.eq.s32.totalorder %s24, 1
      %p59 = por %p57, %p58
      %p61 = scmp.ne.s32.totalorder %s44, %s60
      %p62 = scmp.eq.s32.totalorder %s24, 0
      %p63 = por %p61, %p62
      %s64 = ssub.s32 %s26, %s33
      %p65 = scmp.eq.s32.totalorder %s64, 0
      %s67 = sadd.s32 %s66, 1
      %s68 = scalar_select %p65, %s66, %s67
      %p71 = pneg %p65
      %p72 = scmp.eq.s32.totalorder %s18, 1
      %p73 = por %p71, %p72
      %p74 = scmp.ne.s32.totalorder %s66, %s69
      %p75 = scmp.eq.s32.totalorder %s18, 0
      %p76 = por %p74, %p75
      %p77 = scmp.ne.s32.totalorder %s66, %s69
      %p78 = scmp.eq.s32.totalorder %s23, 1
      %p79 = por %p77, %p78
      %p80 = scmp.ne.s32.totalorder %s69, %s70
      %p81 = scmp.eq.s32.totalorder %s23, 0
      %p82 = por %p80, %p81
      %p83 = scmp.ne.s32.totalorder %s69, %s70
      %p84 = scmp.eq.s32.totalorder %s24, 1
      %p85 = por %p83, %p84
      %p87 = scmp.ne.s32.totalorder %s70, %s86
      %p88 = scmp.eq.s32.totalorder %s24, 0
      %p89 = por %p87, %p88
      %s90 = ssub.s32 %s26, %s33
      %p91 = scmp.eq.s32.totalorder %s90, 0
      %s93 = sadd.s32 %s92, 1
      %s94 = scalar_select %p91, %s92, %s93
      %p97 = pneg %p91
      %p98 = scmp.eq.s32.totalorder %s18, 1
      %p99 = por %p97, %p98
      %p100 = scmp.ne.s32.totalorder %s92, %s95
      %p101 = scmp.eq.s32.totalorder %s18, 0
      %p102 = por %p100, %p101
      %p103 = scmp.ne.s32.totalorder %s92, %s95
      %p104 = scmp.eq.s32.totalorder %s23, 1
      %p105 = por %p103, %p104
      %p106 = scmp.ne.s32.totalorder %s95, %s96
      %p107 = scmp.eq.s32.totalorder %s23, 0
      %p108 = por %p106, %p107
      %p109 = scmp.ne.s32.totalorder %s95, %s96
      %p110 = scmp.eq.s32.totalorder %s24, 1
      %p111 = por %p109, %p110
      %p113 = scmp.ne.s32.totalorder %s96, %s112
      %p114 = scmp.eq.s32.totalorder %s24, 0
      %p115 = por %p113, %p114
      %s116 = ssub.s32 %s26, %s33
      %p117 = scmp.eq.s32.totalorder %s116, 0
      %s119 = sadd.s32 %s118, 1
      %s120 = scalar_select %p117, %s118, %s119
      %p123 = pneg %p117
      %p124 = scmp.eq.s32.totalorder %s18, 1
      %p125 = por %p123, %p124
      %p126 = scmp.ne.s32.totalorder %s118, %s121
      %p127 = scmp.eq.s32.totalorder %s18, 0
      %p128 = por %p126, %p127
      %p129 = scmp.ne.s32.totalorder %s118, %s121
      %p130 = scmp.eq.s32.totalorder %s23, 1
      %p131 = por %p129, %p130
      %p132 = scmp.ne.s32.totalorder %s121, %s122
      %p133 = scmp.eq.s32.totalorder %s23, 0
      %p134 = por %p132, %p133
      %p135 = scmp.ne.s32.totalorder %s121, %s122
      %p136 = scmp.eq.s32.totalorder %s24, 1
      %p137 = por %p135, %p136
      %p139 = scmp.ne.s32.totalorder %s122, %s138
      %p140 = scmp.eq.s32.totalorder %s24, 0
      %p141 = por %p139, %p140
      %s142 = ssub.s32 %s25, %s37
      %p143 = scmp.eq.s32.totalorder %s142, 0
      %s145 = sadd.s32 %s144, 1
      %s146 = scalar_select %p143, %s144, %s145
      %p149 = pneg %p143
      %p150 = scmp.eq.s32.totalorder %s18, 1
      %p151 = por %p149, %p150
      %p152 = scmp.ne.s32.totalorder %s144, %s147
      %p153 = scmp.eq.s32.totalorder %s18, 0
      %p154 = por %p152, %p153
      %p155 = scmp.ne.s32.totalorder %s144, %s147
      %p156 = scmp.eq.s32.totalorder %s23, 1
      %p157 = por %p155, %p156
      %p158 = scmp.ne.s32.totalorder %s147, %s148
      %p159 = scmp.eq.s32.totalorder %s23, 0
      %p160 = por %p158, %p159
      %p161 = scmp.ne.s32.totalorder %s147, %s148
      %p162 = scmp.eq.s32.totalorder %s24, 1
      %p163 = por %p161, %p162
      %p165 = scmp.ne.s32.totalorder %s148, %s164
      %p166 = scmp.eq.s32.totalorder %s24, 0
      %p167 = por %p165, %p166
      %p168 = scmp.le.s32.totalorder 1, %s18
      %p169 = scmp.lt.s32.totalorder %s18, 3
      %p170 = pnand %p168, %p169
      %p171 = pneg %p170
      // Predicated region
      $region9: #{tpu_custom_call.1} parent=5 // pred_check
        _
      $region10: #{tpu_custom_call.1} parent=5 // pred_check_branch
        %173 = sbr.rel (%p170) target = $region12
      $region11: #{tpu_custom_call.1} parent=5 // pred_region
        %s174 = ssub.s32 %s18, 1
        // Predicated region
        $region13: #{tpu_custom_call.1} parent=11 // pred_check
          %p175 = pneg %p56
        $region14: #{tpu_custom_call.1} parent=11 // pred_check_branch
          %177 = sbr.rel (%p175) target = $region16
        $region15: #{tpu_custom_call.1} parent=11 // pred_region
          %s178 = smul.u32 16, %s27
          %s180 = ssub.s32 1024, 1024
          %181 = vsyncadd [#allocation3], %s180
          %s182 = smul.addr %s178, 64
          %s183 = scalar_lea.hbm %s0, %s182
          %s184 = sshll.u32 [#allocation2], 4
          %s185 = int_to_ptr.vmem [resolvable:$true] %s184
          %190 = dma.hbm_to_vmem [thread:$0]  %s183, 1024, %s185, [#allocation3], 64, 64, 4
        $region16: #{tpu_custom_call.1} parent=11 // pred_fallthru
          _
      $region12: #{tpu_custom_call.1} parent=5 // pred_fallthru
        _
      %p191 = scmp.lt.s32.totalorder %s18, 2
      // Predicated region
      $region17: #{tpu_custom_call.1} parent=5 // pred_check
        %p192 = pneg %p191
      $region18: #{tpu_custom_call.1} parent=5 // pred_check_branch
        %194 = sbr.rel (%p192) target = $region20
      $region19: #{tpu_custom_call.1} parent=5 // pred_region
        // Predicated region
        $region21: #{tpu_custom_call.1} parent=19 // pred_check
          %p195 = pneg %p76
        $region22: #{tpu_custom_call.1} parent=19 // pred_check_branch
          %197 = sbr.rel (%p195) target = $region24
        $region23: #{tpu_custom_call.1} parent=19 // pred_region
          %s198 = sand.u32 %s18, 1
          %s199 = scalar_lea.sflag [#allocation6], %s198
          %s200 = sand.u32 %s66, 1
          %s201 = smul.addr %s200, 128
          %s202 = scalar_lea.vmem [#allocation5], %s201
          %s203 = smul.u32 2, %s26
          %s205 = ssub.s32 2048, 2048
          %206 = vsyncadd %s199, %s205
          %s207 = smul.addr %s203, 64
          %s208 = scalar_lea.hbm %s1, %s207
          %s209 = sshll.u32 %s202, 4
          %s210 = int_to_ptr.vmem [resolvable:$true] %s209
          %215 = dma.hbm_to_vmem [thread:$0]  %s208, 2048, %s210, %s199, 256, 128, 8
        $region24: #{tpu_custom_call.1} parent=19 // pred_fallthru
          _
        // Predicated region
        $region25: #{tpu_custom_call.1} parent=19 // pred_check
          %p216 = pneg %p102
        $region26: #{tpu_custom_call.1} parent=19 // pred_check_branch
          %218 = sbr.rel (%p216) target = $region28
        $region27: #{tpu_custom_call.1} parent=19 // pred_region
          %s219 = sand.u32 %s18, 1
          %s220 = scalar_lea.sflag [#allocation6], %s219
          %s221 = sand.u32 %s92, 1
          %s222 = smul.addr %s221, 128
          %s223 = scalar_lea.vmem [#allocation7], %s222
          %s224 = smul.u32 2, %s26
          %s226 = ssub.s32 2048, 2048
          %227 = vsyncadd %s220, %s226
          %s228 = smul.addr %s224, 64
          %s229 = scalar_lea.hbm %s2, %s228
          %s230 = sshll.u32 %s223, 4
          %s231 = int_to_ptr.vmem [resolvable:$true] %s230
          %236 = dma.hbm_to_vmem [thread:$0]  %s229, 2048, %s231, %s220, 256, 128, 8
        $region28: #{tpu_custom_call.1} parent=19 // pred_fallthru
          _
        // Predicated region
        $region29: #{tpu_custom_call.1} parent=19 // pred_check
          %p237 = pneg %p128
        $region30: #{tpu_custom_call.1} parent=19 // pred_check_branch
          %239 = sbr.rel (%p237) target = $region32
        $region31: #{tpu_custom_call.1} parent=19 // pred_region
          %s240 = sand.u32 %s118, 1
          %s241 = scalar_lea.sflag [#allocation9], %s240
          %s242 = sand.u32 %s118, 1
          %s243 = smul.addr %s242, 128
          %s244 = scalar_lea.vmem [#allocation8], %s243
          %s245 = smul.u32 32, %s26
          %s247 = ssub.s32 2048, 2048
          %248 = vsyncadd %s241, %s247
          %s249 = smul.addr %s245, 64
          %s250 = scalar_lea.hbm %s3, %s249
          %s251 = sshll.u32 %s244, 4
          %s252 = int_to_ptr.vmem [resolvable:$true] %s251
          %257 = dma.hbm_to_vmem [thread:$0]  %s250, 2048, %s252, %s241, 64, 64, 4
        $region32: #{tpu_custom_call.1} parent=19 // pred_fallthru
          _
      $region20: #{tpu_custom_call.1} parent=5 // pred_fallthru
        _
      %p258 = scmp.le.s32.totalorder 1, %s18
      %p259 = scmp.lt.s32.totalorder %s18, 3
      %p260 = pnand %p258, %p259
      %p261 = pneg %p260
      // Predicated region
      $region33: #{tpu_custom_call.1} parent=5 // pred_check
        _
      $region34: #{tpu_custom_call.1} parent=5 // pred_check_branch
        %263 = sbr.rel (%p260) target = $region36
      $region35: #{tpu_custom_call.1} parent=5 // pred_region
        %s264 = ssub.s32 %s18, 1
        // Predicated region
        $region37: #{tpu_custom_call.1} parent=35 // pred_check
          %p265 = pneg %p56
        $region38: #{tpu_custom_call.1} parent=35 // pred_check_branch
          %267 = sbr.rel (%p265) target = $region40
        $region39: #{tpu_custom_call.1} parent=35 // pred_region
          %268 = dma.done [#allocation3], 1024
        $region40: #{tpu_custom_call.1} parent=35 // pred_fallthru
          _
        %s269 = sand.u32 %s23, 1
        %s270 = scalar_lea.sflag [#allocation6], %s269
        %s271 = sand.u32 %s69, 1
        %s272 = smul.addr %s271, 128
        %s273 = scalar_lea.vmem [#allocation5], %s272
        // Predicated region
        $region41: #{tpu_custom_call.1} parent=35 // pred_check
          %p274 = pneg %p82
        $region42: #{tpu_custom_call.1} parent=35 // pred_check_branch
          %276 = sbr.rel (%p274) target = $region44
        $region43: #{tpu_custom_call.1} parent=35 // pred_region
          %277 = dma.done %s270, 2048
        $region44: #{tpu_custom_call.1} parent=35 // pred_fallthru
          _
        %s278 = sand.u32 %s23, 1
        %s279 = scalar_lea.sflag [#allocation6], %s278
        %s280 = sand.u32 %s95, 1
        %s281 = smul.addr %s280, 128
        %s282 = scalar_lea.vmem [#allocation7], %s281
        // Predicated region
        $region45: #{tpu_custom_call.1} parent=35 // pred_check
          %p283 = pneg %p108
        $region46: #{tpu_custom_call.1} parent=35 // pred_check_branch
          %285 = sbr.rel (%p283) target = $region48
        $region47: #{tpu_custom_call.1} parent=35 // pred_region
          %286 = dma.done %s279, 2048
        $region48: #{tpu_custom_call.1} parent=35 // pred_fallthru
          _
        %s287 = sand.u32 %s121, 1
        %s288 = scalar_lea.sflag [#allocation9], %s287
        %s289 = sand.u32 %s121, 1
        %s290 = smul.addr %s289, 128
        %s291 = scalar_lea.vmem [#allocation8], %s290
        // Predicated region
        $region49: #{tpu_custom_call.1} parent=35 // pred_check
          %p292 = pneg %p134
        $region50: #{tpu_custom_call.1} parent=35 // pred_check_branch
          %294 = sbr.rel (%p292) target = $region52
        $region51: #{tpu_custom_call.1} parent=35 // pred_region
          %295 = dma.done %s288, 2048
        $region52: #{tpu_custom_call.1} parent=35 // pred_fallthru
          _
        %p296 = pneg %p56
        %p297 = pneg %p53
        %s298 = sand.u32 %s23, 1
        %s299 = scalar_lea.sflag [#allocation6], %s298
        %s300 = sand.u32 %s69, 1
        %s301 = smul.addr %s300, 128
        %s302 = scalar_lea.vmem [#allocation5], %s301
        %p303 = pneg %p82
        %p304 = pneg %p79
        %s305 = sand.u32 %s23, 1
        %s306 = scalar_lea.sflag [#allocation6], %s305
        %s307 = sand.u32 %s95, 1
        %s308 = smul.addr %s307, 128
        %s309 = scalar_lea.vmem [#allocation7], %s308
        %p310 = pneg %p108
        %p311 = pneg %p105
        %s312 = sand.u32 %s121, 1
        %s313 = scalar_lea.sflag [#allocation9], %s312
        %s314 = sand.u32 %s121, 1
        %s315 = smul.addr %s314, 128
        %s316 = scalar_lea.vmem [#allocation8], %s315
        %p317 = pneg %p134
        %p318 = pneg %p131
        %p319 = pneg %p160
        %p320 = pneg %p157
        %s321 = smul.u32 16, %s27
        %s322 = smul.u32 2, %s28
        %s323 = smul.u32 2, %s28
        %s324 = smul.u32 32, %s28
        %s325 = smul.u32 16, %s27
        %p327 = scmp.eq.s32.totalorder %s28, 0
        // Predicated region
        $region53: #{tpu_custom_call.1} parent=35 // pred_check
          %p328 = pneg %p327
        $region54: #{tpu_custom_call.1} parent=35 // pred_check_branch
          %330 = sbr.rel (%p328) target = $region56
        $region55: #{tpu_custom_call.1} parent=35 // pred_region
          %331 = vst [vmem:[#allocation10] sm:$0xff] 0.0
          %332 = vst [vmem:[#allocation10 + $0x8] sm:$0xff] 0.0
          %333 = vst [vmem:[#allocation10 + $0x10] sm:$0xff] 0.0
          %334 = vst [vmem:[#allocation10 + $0x18] sm:$0xff] 0.0
          %335 = vst [vmem:[#allocation10 + $0x20] sm:$0xff] 0.0
          %336 = vst [vmem:[#allocation10 + $0x28] sm:$0xff] 0.0
          %337 = vst [vmem:[#allocation10 + $0x30] sm:$0xff] 0.0
          %338 = vst [vmem:[#allocation10 + $0x38] sm:$0xff] 0.0
          %339 = vst [vmem:[#allocation10 + $0x40] sm:$0xff] 0.0
          %340 = vst [vmem:[#allocation10 + $0x48] sm:$0xff] 0.0
          %341 = vst [vmem:[#allocation10 + $0x50] sm:$0xff] 0.0
          %342 = vst [vmem:[#allocation10 + $0x58] sm:$0xff] 0.0
          %343 = vst [vmem:[#allocation10 + $0x60] sm:$0xff] 0.0
          %344 = vst [vmem:[#allocation10 + $0x68] sm:$0xff] 0.0
          %345 = vst [vmem:[#allocation10 + $0x70] sm:$0xff] 0.0
          %346 = vst [vmem:[#allocation10 + $0x78] sm:$0xff] 0.0
        $region56: #{tpu_custom_call.1} parent=35 // pred_fallthru
          _
        %v347 = vld [vmem:[#allocation2] sm:$0xf]
        %v348 = vld [vmem:[#allocation2 + $0x4] sm:$0xf]
        %v349 = vld [vmem:[#allocation2 + $0x8] sm:$0xf]
        %v350 = vld [vmem:[#allocation2 + $0xc] sm:$0xf]
        %v351 = vld [vmem:[#allocation2 + $0x10] sm:$0xf]
        %v352 = vld [vmem:[#allocation2 + $0x14] sm:$0xf]
        %v353 = vld [vmem:[#allocation2 + $0x18] sm:$0xf]
        %v354 = vld [vmem:[#allocation2 + $0x1c] sm:$0xf]
        %v355 = vld [vmem:[#allocation2 + $0x20] sm:$0xf]
        %v356 = vld [vmem:[#allocation2 + $0x24] sm:$0xf]
        %v357 = vld [vmem:[#allocation2 + $0x28] sm:$0xf]
        %v358 = vld [vmem:[#allocation2 + $0x2c] sm:$0xf]
        %v359 = vld [vmem:[#allocation2 + $0x30] sm:$0xf]
        %v360 = vld [vmem:[#allocation2 + $0x34] sm:$0xf]
        %v361 = vld [vmem:[#allocation2 + $0x38] sm:$0xf]
        %v362 = vld [vmem:[#allocation2 + $0x3c] sm:$0xf]
        %v363 = vld [vmem:[%s273] sm:$0xff]
        %v364 = vld [vmem:[%s273 + $0x8] sm:$0xff]
        %v365 = vld [vmem:[%s273 + $0x10] sm:$0xff]
        %v366 = vld [vmem:[%s273 + $0x18] sm:$0xff]
        %v367 = vld [vmem:[%s273 + $0x20] sm:$0xff]
        %v368 = vld [vmem:[%s273 + $0x28] sm:$0xff]
        %v369 = vld [vmem:[%s273 + $0x30] sm:$0xff]
        %v370 = vld [vmem:[%s273 + $0x38] sm:$0xff]
        %v371 = vld [vmem:[%s273 + $0x40] sm:$0xff]
        %v372 = vld [vmem:[%s273 + $0x48] sm:$0xff]
        %v373 = vld [vmem:[%s273 + $0x50] sm:$0xff]
        %v374 = vld [vmem:[%s273 + $0x58] sm:$0xff]
        %v375 = vld [vmem:[%s273 + $0x60] sm:$0xff]
        %v376 = vld [vmem:[%s273 + $0x68] sm:$0xff]
        %v377 = vld [vmem:[%s273 + $0x70] sm:$0xff]
        %v378 = vld [vmem:[%s273 + $0x78] sm:$0xff]
        %v395 = vunpack.c.l.b16 %v347
        %v396 = vunpack.c.l.b16 %v348
        %v397 = vunpack.c.l.b16 %v349
        %v398 = vunpack.c.l.b16 %v350
        %v399 = vunpack.c.l.b16 %v351
        %v400 = vunpack.c.l.b16 %v352
        %v401 = vunpack.c.l.b16 %v353
        %v402 = vunpack.c.l.b16 %v354
        %v403 = vunpack.c.l.b16 %v355
        %v404 = vunpack.c.l.b16 %v356
        %v405 = vunpack.c.l.b16 %v357
        %v406 = vunpack.c.l.b16 %v358
        %v407 = vunpack.c.l.b16 %v359
        %v408 = vunpack.c.l.b16 %v360
        %v409 = vunpack.c.l.b16 %v361
        %v410 = vunpack.c.l.b16 %v362
        %v411 = vpack.c.b16 %v396, %v395
        %v412 = vpack.c.b16 %v398, %v397
        %v413 = vpack.c.b16 %v400, %v399
        %v414 = vpack.c.b16 %v402, %v401
        %v415 = vpack.c.b16 %v404, %v403
        %v416 = vpack.c.b16 %v406, %v405
        %v417 = vpack.c.b16 %v408, %v407
        %v418 = vpack.c.b16 %v410, %v409
        %v443 = vunpack.c.l.b16 %v363
        %v444 = vunpack.c.h.b16 %v363
        %v445 = vunpack.c.l.b16 %v364
        %v446 = vunpack.c.h.b16 %v364
        %v447 = vunpack.c.l.b16 %v365
        %v448 = vunpack.c.h.b16 %v365
        %v449 = vunpack.c.l.b16 %v366
        %v450 = vunpack.c.h.b16 %v366
        %v451 = vunpack.c.l.b16 %v367
        %v452 = vunpack.c.h.b16 %v367
        %v453 = vunpack.c.l.b16 %v368
        %v454 = vunpack.c.h.b16 %v368
        %v455 = vunpack.c.l.b16 %v369
        %v456 = vunpack.c.h.b16 %v369
        %v457 = vunpack.c.l.b16 %v370
        %v458 = vunpack.c.h.b16 %v370
        %v459 = vunpack.c.l.b16 %v371
        %v460 = vunpack.c.h.b16 %v371
        %v461 = vunpack.c.l.b16 %v372
        %v462 = vunpack.c.h.b16 %v372
        %v463 = vunpack.c.l.b16 %v373
        %v464 = vunpack.c.h.b16 %v373
        %v465 = vunpack.c.l.b16 %v374
        %v466 = vunpack.c.h.b16 %v374
        %v467 = vunpack.c.l.b16 %v375
        %v468 = vunpack.c.h.b16 %v375
        %v469 = vunpack.c.l.b16 %v376
        %v470 = vunpack.c.h.b16 %v376
        %v471 = vunpack.c.l.b16 %v377
        %v472 = vunpack.c.h.b16 %v377
        %v473 = vunpack.c.l.b16 %v378
        %v474 = vunpack.c.h.b16 %v378
        %v475 = vpack.c.b16 %v445, %v443
        %v476 = vpack.c.b16 %v446, %v444
        %v477 = vpack.c.b16 %v449, %v447
        %v478 = vpack.c.b16 %v450, %v448
        %v479 = vpack.c.b16 %v453, %v451
        %v480 = vpack.c.b16 %v454, %v452
        %v481 = vpack.c.b16 %v457, %v455
        %v482 = vpack.c.b16 %v458, %v456
        %v483 = vpack.c.b16 %v461, %v459
        %v484 = vpack.c.b16 %v462, %v460
        %v485 = vpack.c.b16 %v465, %v463
        %v486 = vpack.c.b16 %v466, %v464
        %v487 = vpack.c.b16 %v469, %v467
        %v488 = vpack.c.b16 %v470, %v468
        %v489 = vpack.c.b16 %v473, %v471
        %v490 = vpack.c.b16 %v474, %v472
        %507 = vmatprep.subr.bf16.mxu0 %v476
        %508 = vmatpush1.bf16.msra.mxu0 %v475
        %509 = vmatprep.subr.bf16.mxu0 %v478
        %510 = vmatpush1.bf16.msra.mxu0 %v477
        %511 = vmatprep.subr.bf16.mxu0 %v480
        %512 = vmatpush1.bf16.msra.mxu0 %v479
        %513 = vmatprep.subr.bf16.mxu0 %v482
        %514 = vmatpush1.bf16.msra.mxu0 %v481
        %515 = vmatprep.subr.bf16.mxu0 %v484
        %516 = vmatpush1.bf16.msra.mxu0 %v483
        %517 = vmatprep.subr.bf16.mxu0 %v486
        %518 = vmatpush1.bf16.msra.mxu0 %v485
        %519 = vmatprep.subr.bf16.mxu0 %v488
        %520 = vmatpush1.bf16.msra.mxu0 %v487
        %521 = vmatprep.subr.bf16.mxu0 %v490
        %522 = vmatpush1.bf16.msra.mxu0 %v489
        %523 = vmatprep.subr.bf16.mxu0 0
        %524 = vmatpush1.bf16.msra.mxu0 0
        %525 = vmatprep.subr.bf16.mxu0 0
        %526 = vmatpush1.bf16.msra.mxu0 0
        %527 = vmatprep.subr.bf16.mxu0 0
        %528 = vmatpush1.bf16.msra.mxu0 0
        %529 = vmatprep.subr.bf16.mxu0 0
        %530 = vmatpush1.bf16.msra.mxu0 0
        %531 = vmatprep.subr.bf16.mxu0 0
        %532 = vmatpush1.bf16.msra.mxu0 0
        %533 = vmatprep.subr.bf16.mxu0 0
        %534 = vmatpush1.bf16.msra.mxu0 0
        %535 = vmatprep.subr.bf16.mxu0 0
        %536 = vmatpush1.bf16.msra.mxu0 0
        %537 = vmatprep.subr.bf16.mxu0 0
        %538 = vmatpush1.bf16.msra.mxu0 0
        %539 = vmatprep.mubr.bf16.mxu0 0
        %540 = vmatmul.mubr.bf16.gmra.mrb[0].mxu0 %v411
        %v541 = vpop.f32.mrb[0].mxu0
        %v542 = vadd.f32 0.0, %v541
        %v543 = vpop.f32.mrb[0].mxu0
        %v544 = vadd.f32 0.0, %v543
        %v545 = vpop.f32.mrb[0].mxu0
        %v546 = vadd.f32 0.0, %v545
        %v547 = vpop.f32.mrb[0].mxu0
        %v548 = vadd.f32 0.0, %v547
        %549 = vmatprep.mubr.bf16.mxu0 0
        %550 = vmatmul.mubr.bf16.gmra.mrb[0].mxu0 %v412
        %v551 = vpop.f32.mrb[0].mxu0
        %v552 = vadd.f32 0.0, %v551
        %v553 = vpop.f32.mrb[0].mxu0
        %v554 = vadd.f32 0.0, %v553
        %v555 = vpop.f32.mrb[0].mxu0
        %v556 = vadd.f32 0.0, %v555
        %v557 = vpop.f32.mrb[0].mxu0
        %v558 = vadd.f32 0.0, %v557
        %559 = vmatprep.mubr.bf16.mxu0 0
        %560 = vmatmul.mubr.bf16.gmra.mrb[0].mxu0 %v413
        %v561 = vpop.f32.mrb[0].mxu0
        %v562 = vadd.f32 0.0, %v561
        %v563 = vpop.f32.mrb[0].mxu0
        %v564 = vadd.f32 0.0, %v563
        %v565 = vpop.f32.mrb[0].mxu0
        %v566 = vadd.f32 0.0, %v565
        %v567 = vpop.f32.mrb[0].mxu0
        %v568 = vadd.f32 0.0, %v567
        %569 = vmatprep.mubr.bf16.mxu0 0
        %570 = vmatmul.mubr.bf16.gmra.mrb[0].mxu0 %v414
        %v571 = vpop.f32.mrb[0].mxu0
        %v572 = vadd.f32 0.0, %v571
        %v573 = vpop.f32.mrb[0].mxu0
        %v574 = vadd.f32 0.0, %v573
        %v575 = vpop.f32.mrb[0].mxu0
        %v576 = vadd.f32 0.0, %v575
        %v577 = vpop.f32.mrb[0].mxu0
        %v578 = vadd.f32 0.0, %v577
        %579 = vmatprep.mubr.bf16.mxu0 0
        %580 = vmatmul.mubr.bf16.gmra.mrb[0].mxu0 %v415
        %v581 = vpop.f32.mrb[0].mxu0
        %v582 = vadd.f32 0.0, %v581
        %v583 = vpop.f32.mrb[0].mxu0
        %v584 = vadd.f32 0.0, %v583
        %v585 = vpop.f32.mrb[0].mxu0
        %v586 = vadd.f32 0.0, %v585
        %v587 = vpop.f32.mrb[0].mxu0
        %v588 = vadd.f32 0.0, %v587
        %589 = vmatprep.mubr.bf16.mxu0 0
        %590 = vmatmul.mubr.bf16.gmra.mrb[0].mxu0 %v416
        %v591 = vpop.f32.mrb[0].mxu0
        %v592 = vadd.f32 0.0, %v591
        %v593 = vpop.f32.mrb[0].mxu0
        %v594 = vadd.f32 0.0, %v593
        %v595 = vpop.f32.mrb[0].mxu0
        %v596 = vadd.f32 0.0, %v595
        %v597 = vpop.f32.mrb[0].mxu0
        %v598 = vadd.f32 0.0, %v597
        %599 = vmatprep.mubr.bf16.mxu0 0
        %600 = vmatmul.mubr.bf16.gmra.mrb[0].mxu0 %v417
        %v601 = vpop.f32.mrb[0].mxu0
        %v602 = vadd.f32 0.0, %v601
        %v603 = vpop.f32.mrb[0].mxu0
        %v604 = vadd.f32 0.0, %v603
        %v605 = vpop.f32.mrb[0].mxu0
        %v606 = vadd.f32 0.0, %v605
        %v607 = vpop.f32.mrb[0].mxu0
        %v608 = vadd.f32 0.0, %v607
        %609 = vmatprep.mubr.bf16.mxu0 0
        %610 = vmatmul.mubr.bf16.gmra.mrb[0].mxu0 %v418
        %v611 = vpop.f32.mrb[0].mxu0
        %v612 = vadd.f32 0.0, %v611
        %v613 = vpop.f32.mrb[0].mxu0
        %v614 = vadd.f32 0.0, %v613
        %v615 = vpop.f32.mrb[0].mxu0
        %v616 = vadd.f32 0.0, %v615
        %v617 = vpop.f32.mrb[0].mxu0
        %v618 = vadd.f32 0.0, %v617
        %619 = vdwg.mxu0
        %v620 = vld [vmem:[%s282] sm:$0xff]
        %v621 = vld [vmem:[%s282 + $0x8] sm:$0xff]
        %v622 = vld [vmem:[%s282 + $0x10] sm:$0xff]
        %v623 = vld [vmem:[%s282 + $0x18] sm:$0xff]
        %v624 = vld [vmem:[%s282 + $0x20] sm:$0xff]
        %v625 = vld [vmem:[%s282 + $0x28] sm:$0xff]
        %v626 = vld [vmem:[%s282 + $0x30] sm:$0xff]
        %v627 = vld [vmem:[%s282 + $0x38] sm:$0xff]
        %v628 = vld [vmem:[%s282 + $0x40] sm:$0xff]
        %v629 = vld [vmem:[%s282 + $0x48] sm:$0xff]
        %v630 = vld [vmem:[%s282 + $0x50] sm:$0xff]
        %v631 = vld [vmem:[%s282 + $0x58] sm:$0xff]
        %v632 = vld [vmem:[%s282 + $0x60] sm:$0xff]
        %v633 = vld [vmem:[%s282 + $0x68] sm:$0xff]
        %v634 = vld [vmem:[%s282 + $0x70] sm:$0xff]
        %v635 = vld [vmem:[%s282 + $0x78] sm:$0xff]
        %v652 = vunpack.c.l.b16 %v620
        %v653 = vunpack.c.h.b16 %v620
        %v654 = vunpack.c.l.b16 %v621
        %v655 = vunpack.c.h.b16 %v621
        %v656 = vunpack.c.l.b16 %v622
        %v657 = vunpack.c.h.b16 %v622
        %v658 = vunpack.c.l.b16 %v623
        %v659 = vunpack.c.h.b16 %v623
        %v660 = vunpack.c.l.b16 %v624
        %v661 = vunpack.c.h.b16 %v624
        %v662 = vunpack.c.l.b16 %v625
        %v663 = vunpack.c.h.b16 %v625
        %v664 = vunpack.c.l.b16 %v626
        %v665 = vunpack.c.h.b16 %v626
        %v666 = vunpack.c.l.b16 %v627
        %v667 = vunpack.c.h.b16 %v627
        %v668 = vunpack.c.l.b16 %v628
        %v669 = vunpack.c.h.b16 %v628
        %v670 = vunpack.c.l.b16 %v629
        %v671 = vunpack.c.h.b16 %v629
        %v672 = vunpack.c.l.b16 %v630
        %v673 = vunpack.c.h.b16 %v630
        %v674 = vunpack.c.l.b16 %v631
        %v675 = vunpack.c.h.b16 %v631
        %v676 = vunpack.c.l.b16 %v632
        %v677 = vunpack.c.h.b16 %v632
        %v678 = vunpack.c.l.b16 %v633
        %v679 = vunpack.c.h.b16 %v633
        %v680 = vunpack.c.l.b16 %v634
        %v681 = vunpack.c.h.b16 %v634
        %v682 = vunpack.c.l.b16 %v635
        %v683 = vunpack.c.h.b16 %v635
        %v684 = vpack.c.b16 %v654, %v652
        %v685 = vpack.c.b16 %v655, %v653
        %v686 = vpack.c.b16 %v658, %v656
        %v687 = vpack.c.b16 %v659, %v657
        %v688 = vpack.c.b16 %v662, %v660
        %v689 = vpack.c.b16 %v663, %v661
        %v690 = vpack.c.b16 %v666, %v664
        %v691 = vpack.c.b16 %v667, %v665
        %v692 = vpack.c.b16 %v670, %v668
        %v693 = vpack.c.b16 %v671, %v669
        %v694 = vpack.c.b16 %v674, %v672
        %v695 = vpack.c.b16 %v675, %v673
        %v696 = vpack.c.b16 %v678, %v676
        %v697 = vpack.c.b16 %v679, %v677
        %v698 = vpack.c.b16 %v682, %v680
        %v699 = vpack.c.b16 %v683, %v681
        %716 = vmatprep.subr.bf16.mxu0 %v685
        %717 = vmatpush1.bf16.msra.mxu0 %v684
        %718 = vmatprep.subr.bf16.mxu0 %v687
        %719 = vmatpush1.bf16.msra.mxu0 %v686
        %720 = vmatprep.subr.bf16.mxu0 %v689
        %721 = vmatpush1.bf16.msra.mxu0 %v688
        %722 = vmatprep.subr.bf16.mxu0 %v691
        %723 = vmatpush1.bf16.msra.mxu0 %v690
        %724 = vmatprep.subr.bf16.mxu0 %v693
        %725 = vmatpush1.bf16.msra.mxu0 %v692
        %726 = vmatprep.subr.bf16.mxu0 %v695
        %727 = vmatpush1.bf16.msra.mxu0 %v694
        %728 = vmatprep.subr.bf16.mxu0 %v697
        %729 = vmatpush1.bf16.msra.mxu0 %v696
        %730 = vmatprep.subr.bf16.mxu0 %v699
        %731 = vmatpush1.bf16.msra.mxu0 %v698
        %732 = vmatprep.subr.bf16.mxu0 0
        %733 = vmatpush1.bf16.msra.mxu0 0
        %734 = vmatprep.subr.bf16.mxu0 0
        %735 = vmatpush1.bf16.msra.mxu0 0
        %736 = vmatprep.subr.bf16.mxu0 0
        %737 = vmatpush1.bf16.msra.mxu0 0
        %738 = vmatprep.subr.bf16.mxu0 0
        %739 = vmatpush1.bf16.msra.mxu0 0
        %740 = vmatprep.subr.bf16.mxu0 0
        %741 = vmatpush1.bf16.msra.mxu0 0
        %742 = vmatprep.subr.bf16.mxu0 0
        %743 = vmatpush1.bf16.msra.mxu0 0
        %744 = vmatprep.subr.bf16.mxu0 0
        %745 = vmatpush1.bf16.msra.mxu0 0
        %746 = vmatprep.subr.bf16.mxu0 0
        %747 = vmatpush1.bf16.msra.mxu0 0
        %748 = vmatprep.mubr.bf16.mxu0 0
        %749 = vmatmul.mubr.bf16.gmra.mrb[0].mxu0 %v411
        %v750 = vpop.f32.mrb[0].mxu0
        %v751 = vadd.f32 0.0, %v750
        %v752 = vpop.f32.mrb[0].mxu0
        %v753 = vadd.f32 0.0, %v752
        %v754 = vpop.f32.mrb[0].mxu0
        %v755 = vadd.f32 0.0, %v754
        %v756 = vpop.f32.mrb[0].mxu0
        %v757 = vadd.f32 0.0, %v756
        %758 = vmatprep.mubr.bf16.mxu0 0
        %759 = vmatmul.mubr.bf16.gmra.mrb[0].mxu0 %v412
        %v760 = vpop.f32.mrb[0].mxu0
        %v761 = vadd.f32 0.0, %v760
        %v762 = vpop.f32.mrb[0].mxu0
        %v763 = vadd.f32 0.0, %v762
        %v764 = vpop.f32.mrb[0].mxu0
        %v765 = vadd.f32 0.0, %v764
        %v766 = vpop.f32.mrb[0].mxu0
        %v767 = vadd.f32 0.0, %v766
        %768 = vmatprep.mubr.bf16.mxu0 0
        %769 = vmatmul.mubr.bf16.gmra.mrb[0].mxu0 %v413
        %v770 = vpop.f32.mrb[0].mxu0
        %v771 = vadd.f32 0.0, %v770
        %v772 = vpop.f32.mrb[0].mxu0
        %v773 = vadd.f32 0.0, %v772
        %v774 = vpop.f32.mrb[0].mxu0
        %v775 = vadd.f32 0.0, %v774
        %v776 = vpop.f32.mrb[0].mxu0
        %v777 = vadd.f32 0.0, %v776
        %778 = vmatprep.mubr.bf16.mxu0 0
        %779 = vmatmul.mubr.bf16.gmra.mrb[0].mxu0 %v414
        %v780 = vpop.f32.mrb[0].mxu0
        %v781 = vadd.f32 0.0, %v780
        %v782 = vpop.f32.mrb[0].mxu0
        %v783 = vadd.f32 0.0, %v782
        %v784 = vpop.f32.mrb[0].mxu0
        %v785 = vadd.f32 0.0, %v784
        %v786 = vpop.f32.mrb[0].mxu0
        %v787 = vadd.f32 0.0, %v786
        %788 = vmatprep.mubr.bf16.mxu0 0
        %789 = vmatmul.mubr.bf16.gmra.mrb[0].mxu0 %v415
        %v790 = vpop.f32.mrb[0].mxu0
        %v791 = vadd.f32 0.0, %v790
        %v792 = vpop.f32.mrb[0].mxu0
        %v793 = vadd.f32 0.0, %v792
        %v794 = vpop.f32.mrb[0].mxu0
        %v795 = vadd.f32 0.0, %v794
        %v796 = vpop.f32.mrb[0].mxu0
        %v797 = vadd.f32 0.0, %v796
        %798 = vmatprep.mubr.bf16.mxu0 0
        %799 = vmatmul.mubr.bf16.gmra.mrb[0].mxu0 %v416
        %v800 = vpop.f32.mrb[0].mxu0
        %v801 = vadd.f32 0.0, %v800
        %v802 = vpop.f32.mrb[0].mxu0
        %v803 = vadd.f32 0.0, %v802
        %v804 = vpop.f32.mrb[0].mxu0
        %v805 = vadd.f32 0.0, %v804
        %v806 = vpop.f32.mrb[0].mxu0
        %v807 = vadd.f32 0.0, %v806
        %808 = vmatprep.mubr.bf16.mxu0 0
        %809 = vmatmul.mubr.bf16.gmra.mrb[0].mxu0 %v417
        %v810 = vpop.f32.mrb[0].mxu0
        %v811 = vadd.f32 0.0, %v810
        %v812 = vpop.f32.mrb[0].mxu0
        %v813 = vadd.f32 0.0, %v812
        %v814 = vpop.f32.mrb[0].mxu0
        %v815 = vadd.f32 0.0, %v814
        %v816 = vpop.f32.mrb[0].mxu0
        %v817 = vadd.f32 0.0, %v816
        %818 = vmatprep.mubr.bf16.mxu0 0
        %819 = vmatmul.mubr.bf16.gmra.mrb[0].mxu0 %v418
        %v820 = vpop.f32.mrb[0].mxu0
        %v821 = vadd.f32 0.0, %v820
        %v822 = vpop.f32.mrb[0].mxu0
        %v823 = vadd.f32 0.0, %v822
        %v824 = vpop.f32.mrb[0].mxu0
        %v825 = vadd.f32 0.0, %v824
        %v826 = vpop.f32.mrb[0].mxu0
        %v827 = vadd.f32 0.0, %v826
        %828 = vdwg.mxu0
        %v829 = vxor.u32 %v542, 2147483648
        %v830 = vxor.u32 %v544, 2147483648
        %v831 = vxor.u32 %v546, 2147483648
        %v832 = vxor.u32 %v548, 2147483648
        %v833 = vxor.u32 %v552, 2147483648
        %v834 = vxor.u32 %v554, 2147483648
        %v835 = vxor.u32 %v556, 2147483648
        %v836 = vxor.u32 %v558, 2147483648
        %v837 = vxor.u32 %v562, 2147483648
        %v838 = vxor.u32 %v564, 2147483648
        %v839 = vxor.u32 %v566, 2147483648
        %v840 = vxor.u32 %v568, 2147483648
        %v841 = vxor.u32 %v572, 2147483648
        %v842 = vxor.u32 %v574, 2147483648
        %v843 = vxor.u32 %v576, 2147483648
        %v844 = vxor.u32 %v578, 2147483648
        %v845 = vxor.u32 %v582, 2147483648
        %v846 = vxor.u32 %v584, 2147483648
        %v847 = vxor.u32 %v586, 2147483648
        %v848 = vxor.u32 %v588, 2147483648
        %v849 = vxor.u32 %v592, 2147483648
        %v850 = vxor.u32 %v594, 2147483648
        %v851 = vxor.u32 %v596, 2147483648
        %v852 = vxor.u32 %v598, 2147483648
        %v853 = vxor.u32 %v602, 2147483648
        %v854 = vxor.u32 %v604, 2147483648
        %v855 = vxor.u32 %v606, 2147483648
        %v856 = vxor.u32 %v608, 2147483648
        %v857 = vxor.u32 %v612, 2147483648
        %v858 = vxor.u32 %v614, 2147483648
        %v859 = vxor.u32 %v616, 2147483648
        %v860 = vxor.u32 %v618, 2147483648
        %v861 = vmul.f32 %v829, 1.442695
        %v862 = vpow.pop %v861
        %v863 = vmul.f32 %v830, 1.442695
        %v864 = vpow.pop %v863
        %v865 = vmul.f32 %v831, 1.442695
        %v866 = vpow.pop %v865
        %v867 = vmul.f32 %v832, 1.442695
        %v868 = vpow.pop %v867
        %v869 = vmul.f32 %v833, 1.442695
        %v870 = vpow.pop %v869
        %v871 = vmul.f32 %v834, 1.442695
        %v872 = vpow.pop %v871
        %v873 = vmul.f32 %v835, 1.442695
        %v874 = vpow.pop %v873
        %v875 = vmul.f32 %v836, 1.442695
        %v876 = vpow.pop %v875
        %v877 = vmul.f32 %v837, 1.442695
        %v878 = vpow.pop %v877
        %v879 = vmul.f32 %v838, 1.442695
        %v880 = vpow.pop %v879
        %v881 = vmul.f32 %v839, 1.442695
        %v882 = vpow.pop %v881
        %v883 = vmul.f32 %v840, 1.442695
        %v884 = vpow.pop %v883
        %v885 = vmul.f32 %v841, 1.442695
        %v886 = vpow.pop %v885
        %v887 = vmul.f32 %v842, 1.442695
        %v888 = vpow.pop %v887
        %v889 = vmul.f32 %v843, 1.442695
        %v890 = vpow.pop %v889
        %v891 = vmul.f32 %v844, 1.442695
        %v892 = vpow.pop %v891
        %v893 = vmul.f32 %v845, 1.442695
        %v894 = vpow.pop %v893
        %v895 = vmul.f32 %v846, 1.442695
        %v896 = vpow.pop %v895
        %v897 = vmul.f32 %v847, 1.442695
        %v898 = vpow.pop %v897
        %v899 = vmul.f32 %v848, 1.442695
        %v900 = vpow.pop %v899
        %v901 = vmul.f32 %v849, 1.442695
        %v902 = vpow.pop %v901
        %v903 = vmul.f32 %v850, 1.442695
        %v904 = vpow.pop %v903
        %v905 = vmul.f32 %v851, 1.442695
        %v906 = vpow.pop %v905
        %v907 = vmul.f32 %v852, 1.442695
        %v908 = vpow.pop %v907
        %v909 = vmul.f32 %v853, 1.442695
        %v910 = vpow.pop %v909
        %v911 = vmul.f32 %v854, 1.442695
        %v912 = vpow.pop %v911
        %v913 = vmul.f32 %v855, 1.442695
        %v914 = vpow.pop %v913
        %v915 = vmul.f32 %v856, 1.442695
        %v916 = vpow.pop %v915
        %v917 = vmul.f32 %v857, 1.442695
        %v918 = vpow.pop %v917
        %v919 = vmul.f32 %v858, 1.442695
        %v920 = vpow.pop %v919
        %v921 = vmul.f32 %v859, 1.442695
        %v922 = vpow.pop %v921
        %v923 = vmul.f32 %v860, 1.442695
        %v924 = vpow.pop %v923
        %v925 = vadd.f32 %v862, 1.0
        %v926 = vadd.f32 %v864, 1.0
        %v927 = vadd.f32 %v866, 1.0
        %v928 = vadd.f32 %v868, 1.0
        %v929 = vadd.f32 %v870, 1.0
        %v930 = vadd.f32 %v872, 1.0
        %v931 = vadd.f32 %v874, 1.0
        %v932 = vadd.f32 %v876, 1.0
        %v933 = vadd.f32 %v878, 1.0
        %v934 = vadd.f32 %v880, 1.0
        %v935 = vadd.f32 %v882, 1.0
        %v936 = vadd.f32 %v884, 1.0
        %v937 = vadd.f32 %v886, 1.0
        %v938 = vadd.f32 %v888, 1.0
        %v939 = vadd.f32 %v890, 1.0
        %v940 = vadd.f32 %v892, 1.0
        %v941 = vadd.f32 %v894, 1.0
        %v942 = vadd.f32 %v896, 1.0
        %v943 = vadd.f32 %v898, 1.0
        %v944 = vadd.f32 %v900, 1.0
        %v945 = vadd.f32 %v902, 1.0
        %v946 = vadd.f32 %v904, 1.0
        %v947 = vadd.f32 %v906, 1.0
        %v948 = vadd.f32 %v908, 1.0
        %v949 = vadd.f32 %v910, 1.0
        %v950 = vadd.f32 %v912, 1.0
        %v951 = vadd.f32 %v914, 1.0
        %v952 = vadd.f32 %v916, 1.0
        %v953 = vadd.f32 %v918, 1.0
        %v954 = vadd.f32 %v920, 1.0
        %v955 = vadd.f32 %v922, 1.0
        %v956 = vadd.f32 %v924, 1.0
        %v957 = vrcp.pop %v925
        %v958 = vmul.f32 1.0, %v957
        %v959 = vrcp.pop %v926
        %v960 = vmul.f32 1.0, %v959
        %v961 = vrcp.pop %v927
        %v962 = vmul.f32 1.0, %v961
        %v963 = vrcp.pop %v928
        %v964 = vmul.f32 1.0, %v963
        %v965 = vrcp.pop %v929
        %v966 = vmul.f32 1.0, %v965
        %v967 = vrcp.pop %v930
        %v968 = vmul.f32 1.0, %v967
        %v969 = vrcp.pop %v931
        %v970 = vmul.f32 1.0, %v969
        %v971 = vrcp.pop %v932
        %v972 = vmul.f32 1.0, %v971
        %v973 = vrcp.pop %v933
        %v974 = vmul.f32 1.0, %v973
        %v975 = vrcp.pop %v934
        %v976 = vmul.f32 1.0, %v975
        %v977 = vrcp.pop %v935
        %v978 = vmul.f32 1.0, %v977
        %v979 = vrcp.pop %v936
        %v980 = vmul.f32 1.0, %v979
        %v981 = vrcp.pop %v937
        %v982 = vmul.f32 1.0, %v981
        %v983 = vrcp.pop %v938
        %v984 = vmul.f32 1.0, %v983
        %v985 = vrcp.pop %v939
        %v986 = vmul.f32 1.0, %v985
        %v987 = vrcp.pop %v940
        %v988 = vmul.f32 1.0, %v987
        %v989 = vrcp.pop %v941
        %v990 = vmul.f32 1.0, %v989
        %v991 = vrcp.pop %v942
        %v992 = vmul.f32 1.0, %v991
        %v993 = vrcp.pop %v943
        %v994 = vmul.f32 1.0, %v993
        %v995 = vrcp.pop %v944
        %v996 = vmul.f32 1.0, %v995
        %v997 = vrcp.pop %v945
        %v998 = vmul.f32 1.0, %v997
        %v999 = vrcp.pop %v946
        %v1000 = vmul.f32 1.0, %v999
        %v1001 = vrcp.pop %v947
        %v1002 = vmul.f32 1.0, %v1001
        %v1003 = vrcp.pop %v948
        %v1004 = vmul.f32 1.0, %v1003
        %v1005 = vrcp.pop %v949
        %v1006 = vmul.f32 1.0, %v1005
        %v1007 = vrcp.pop %v950
        %v1008 = vmul.f32 1.0, %v1007
        %v1009 = vrcp.pop %v951
        %v1010 = vmul.f32 1.0, %v1009
        %v1011 = vrcp.pop %v952
        %v1012 = vmul.f32 1.0, %v1011
        %v1013 = vrcp.pop %v953
        %v1014 = vmul.f32 1.0, %v1013
        %v1015 = vrcp.pop %v954
        %v1016 = vmul.f32 1.0, %v1015
        %v1017 = vrcp.pop %v955
        %v1018 = vmul.f32 1.0, %v1017
        %v1019 = vrcp.pop %v956
        %v1020 = vmul.f32 1.0, %v1019
        %v1021 = vmul.f32 %v542, %v958
        %v1022 = vmul.f32 %v544, %v960
        %v1023 = vmul.f32 %v546, %v962
        %v1024 = vmul.f32 %v548, %v964
        %v1025 = vmul.f32 %v552, %v966
        %v1026 = vmul.f32 %v554, %v968
        %v1027 = vmul.f32 %v556, %v970
        %v1028 = vmul.f32 %v558, %v972
        %v1029 = vmul.f32 %v562, %v974
        %v1030 = vmul.f32 %v564, %v976
        %v1031 = vmul.f32 %v566, %v978
        %v1032 = vmul.f32 %v568, %v980
        %v1033 = vmul.f32 %v572, %v982
        %v1034 = vmul.f32 %v574, %v984
        %v1035 = vmul.f32 %v576, %v986
        %v1036 = vmul.f32 %v578, %v988
        %v1037 = vmul.f32 %v582, %v990
        %v1038 = vmul.f32 %v584, %v992
        %v1039 = vmul.f32 %v586, %v994
        %v1040 = vmul.f32 %v588, %v996
        %v1041 = vmul.f32 %v592, %v998
        %v1042 = vmul.f32 %v594, %v1000
        %v1043 = vmul.f32 %v596, %v1002
        %v1044 = vmul.f32 %v598, %v1004
        %v1045 = vmul.f32 %v602, %v1006
        %v1046 = vmul.f32 %v604, %v1008
        %v1047 = vmul.f32 %v606, %v1010
        %v1048 = vmul.f32 %v608, %v1012
        %v1049 = vmul.f32 %v612, %v1014
        %v1050 = vmul.f32 %v614, %v1016
        %v1051 = vmul.f32 %v616, %v1018
        %v1052 = vmul.f32 %v618, %v1020
        %v1053 = vmul.f32 %v1021, %v751
        %v1054 = vmul.f32 %v1022, %v753
        %v1055 = vmul.f32 %v1023, %v755
        %v1056 = vmul.f32 %v1024, %v757
        %v1057 = vmul.f32 %v1025, %v761
        %v1058 = vmul.f32 %v1026, %v763
        %v1059 = vmul.f32 %v1027, %v765
        %v1060 = vmul.f32 %v1028, %v767
        %v1061 = vmul.f32 %v1029, %v771
        %v1062 = vmul.f32 %v1030, %v773
        %v1063 = vmul.f32 %v1031, %v775
        %v1064 = vmul.f32 %v1032, %v777
        %v1065 = vmul.f32 %v1033, %v781
        %v1066 = vmul.f32 %v1034, %v783
        %v1067 = vmul.f32 %v1035, %v785
        %v1068 = vmul.f32 %v1036, %v787
        %v1069 = vmul.f32 %v1037, %v791
        %v1070 = vmul.f32 %v1038, %v793
        %v1071 = vmul.f32 %v1039, %v795
        %v1072 = vmul.f32 %v1040, %v797
        %v1073 = vmul.f32 %v1041, %v801
        %v1074 = vmul.f32 %v1042, %v803
        %v1075 = vmul.f32 %v1043, %v805
        %v1076 = vmul.f32 %v1044, %v807
        %v1077 = vmul.f32 %v1045, %v811
        %v1078 = vmul.f32 %v1046, %v813
        %v1079 = vmul.f32 %v1047, %v815
        %v1080 = vmul.f32 %v1048, %v817
        %v1081 = vmul.f32 %v1049, %v821
        %v1082 = vmul.f32 %v1050, %v823
        %v1083 = vmul.f32 %v1051, %v825
        %v1084 = vmul.f32 %v1052, %v827
        %v1085 = vld [vmem:[#allocation10] sm:$0xff]
        %v1086 = vld [vmem:[#allocation10 + $0x8] sm:$0xff]
        %v1087 = vld [vmem:[#allocation10 + $0x10] sm:$0xff]
        %v1088 = vld [vmem:[#allocation10 + $0x18] sm:$0xff]
        %v1089 = vld [vmem:[#allocation10 + $0x20] sm:$0xff]
        %v1090 = vld [vmem:[#allocation10 + $0x28] sm:$0xff]
        %v1091 = vld [vmem:[#allocation10 + $0x30] sm:$0xff]
        %v1092 = vld [vmem:[#allocation10 + $0x38] sm:$0xff]
        %v1093 = vld [vmem:[#allocation10 + $0x40] sm:$0xff]
        %v1094 = vld [vmem:[#allocation10 + $0x48] sm:$0xff]
        %v1095 = vld [vmem:[#allocation10 + $0x50] sm:$0xff]
        %v1096 = vld [vmem:[#allocation10 + $0x58] sm:$0xff]
        %v1097 = vld [vmem:[#allocation10 + $0x60] sm:$0xff]
        %v1098 = vld [vmem:[#allocation10 + $0x68] sm:$0xff]
        %v1099 = vld [vmem:[#allocation10 + $0x70] sm:$0xff]
        %v1100 = vld [vmem:[#allocation10 + $0x78] sm:$0xff]
        %v1101 = vpack.c.bf16 %v1055, %v1053
        %v1102 = vpack.c.bf16 %v1056, %v1054
        %v1103 = vpack.c.bf16 %v1059, %v1057
        %v1104 = vpack.c.bf16 %v1060, %v1058
        %v1105 = vpack.c.bf16 %v1063, %v1061
        %v1106 = vpack.c.bf16 %v1064, %v1062
        %v1107 = vpack.c.bf16 %v1067, %v1065
        %v1108 = vpack.c.bf16 %v1068, %v1066
        %v1109 = vpack.c.bf16 %v1071, %v1069
        %v1110 = vpack.c.bf16 %v1072, %v1070
        %v1111 = vpack.c.bf16 %v1075, %v1073
        %v1112 = vpack.c.bf16 %v1076, %v1074
        %v1113 = vpack.c.bf16 %v1079, %v1077
        %v1114 = vpack.c.bf16 %v1080, %v1078
        %v1115 = vpack.c.bf16 %v1083, %v1081
        %v1116 = vpack.c.bf16 %v1084, %v1082
        %v1117 = vld [vmem:[%s291] sm:$0xf]
        %v1118 = vld [vmem:[%s291 + $0x4] sm:$0xf]
        %v1119 = vld [vmem:[%s291 + $0x8] sm:$0xf]
        %v1120 = vld [vmem:[%s291 + $0xc] sm:$0xf]
        %v1121 = vld [vmem:[%s291 + $0x10] sm:$0xf]
        %v1122 = vld [vmem:[%s291 + $0x14] sm:$0xf]
        %v1123 = vld [vmem:[%s291 + $0x18] sm:$0xf]
        %v1124 = vld [vmem:[%s291 + $0x1c] sm:$0xf]
        %v1125 = vld [vmem:[%s291 + $0x20] sm:$0xf]
        %v1126 = vld [vmem:[%s291 + $0x24] sm:$0xf]
        %v1127 = vld [vmem:[%s291 + $0x28] sm:$0xf]
        %v1128 = vld [vmem:[%s291 + $0x2c] sm:$0xf]
        %v1129 = vld [vmem:[%s291 + $0x30] sm:$0xf]
        %v1130 = vld [vmem:[%s291 + $0x34] sm:$0xf]
        %v1131 = vld [vmem:[%s291 + $0x38] sm:$0xf]
        %v1132 = vld [vmem:[%s291 + $0x3c] sm:$0xf]
        %v1133 = vld [vmem:[%s291 + $0x40] sm:$0xf]
        %v1134 = vld [vmem:[%s291 + $0x44] sm:$0xf]
        %v1135 = vld [vmem:[%s291 + $0x48] sm:$0xf]
        %v1136 = vld [vmem:[%s291 + $0x4c] sm:$0xf]
        %v1137 = vld [vmem:[%s291 + $0x50] sm:$0xf]
        %v1138 = vld [vmem:[%s291 + $0x54] sm:$0xf]
        %v1139 = vld [vmem:[%s291 + $0x58] sm:$0xf]
        %v1140 = vld [vmem:[%s291 + $0x5c] sm:$0xf]
        %v1141 = vld [vmem:[%s291 + $0x60] sm:$0xf]
        %v1142 = vld [vmem:[%s291 + $0x64] sm:$0xf]
        %v1143 = vld [vmem:[%s291 + $0x68] sm:$0xf]
        %v1144 = vld [vmem:[%s291 + $0x6c] sm:$0xf]
        %v1145 = vld [vmem:[%s291 + $0x70] sm:$0xf]
        %v1146 = vld [vmem:[%s291 + $0x74] sm:$0xf]
        %v1147 = vld [vmem:[%s291 + $0x78] sm:$0xf]
        %v1148 = vld [vmem:[%s291 + $0x7c] sm:$0xf]
        %v1181 = vunpack.c.l.b16 %v1117
        %v1182 = vunpack.c.l.b16 %v1118
        %v1183 = vunpack.c.l.b16 %v1119
        %v1184 = vunpack.c.l.b16 %v1120
        %v1185 = vunpack.c.l.b16 %v1121
        %v1186 = vunpack.c.l.b16 %v1122
        %v1187 = vunpack.c.l.b16 %v1123
        %v1188 = vunpack.c.l.b16 %v1124
        %v1189 = vunpack.c.l.b16 %v1125
        %v1190 = vunpack.c.l.b16 %v1126
        %v1191 = vunpack.c.l.b16 %v1127
        %v1192 = vunpack.c.l.b16 %v1128
        %v1193 = vunpack.c.l.b16 %v1129
        %v1194 = vunpack.c.l.b16 %v1130
        %v1195 = vunpack.c.l.b16 %v1131
        %v1196 = vunpack.c.l.b16 %v1132
        %v1197 = vunpack.c.l.b16 %v1133
        %v1198 = vunpack.c.l.b16 %v1134
        %v1199 = vunpack.c.l.b16 %v1135
        %v1200 = vunpack.c.l.b16 %v1136
        %v1201 = vunpack.c.l.b16 %v1137
        %v1202 = vunpack.c.l.b16 %v1138
        %v1203 = vunpack.c.l.b16 %v1139
        %v1204 = vunpack.c.l.b16 %v1140
        %v1205 = vunpack.c.l.b16 %v1141
        %v1206 = vunpack.c.l.b16 %v1142
        %v1207 = vunpack.c.l.b16 %v1143
        %v1208 = vunpack.c.l.b16 %v1144
        %v1209 = vunpack.c.l.b16 %v1145
        %v1210 = vunpack.c.l.b16 %v1146
        %v1211 = vunpack.c.l.b16 %v1147
        %v1212 = vunpack.c.l.b16 %v1148
        %v1213 = vpack.c.b16 %v1182, %v1181
        %v1214 = vpack.c.b16 %v1184, %v1183
        %v1215 = vpack.c.b16 %v1186, %v1185
        %v1216 = vpack.c.b16 %v1188, %v1187
        %v1217 = vpack.c.b16 %v1190, %v1189
        %v1218 = vpack.c.b16 %v1192, %v1191
        %v1219 = vpack.c.b16 %v1194, %v1193
        %v1220 = vpack.c.b16 %v1196, %v1195
        %v1221 = vpack.c.b16 %v1198, %v1197
        %v1222 = vpack.c.b16 %v1200, %v1199
        %v1223 = vpack.c.b16 %v1202, %v1201
        %v1224 = vpack.c.b16 %v1204, %v1203
        %v1225 = vpack.c.b16 %v1206, %v1205
        %v1226 = vpack.c.b16 %v1208, %v1207
        %v1227 = vpack.c.b16 %v1210, %v1209
        %v1228 = vpack.c.b16 %v1212, %v1211
        %1245 = vmatprep.subr.bf16.mxu0 0
        %1246 = vmatpush1.bf16.msra.mxu0 %v1213
        %1247 = vmatprep.subr.bf16.mxu0 0
        %1248 = vmatpush1.bf16.msra.mxu0 %v1214
        %1249 = vmatprep.subr.bf16.mxu0 0
        %1250 = vmatpush1.bf16.msra.mxu0 %v1215
        %1251 = vmatprep.subr.bf16.mxu0 0
        %1252 = vmatpush1.bf16.msra.mxu0 %v1216
        %1253 = vmatprep.subr.bf16.mxu0 0
        %1254 = vmatpush1.bf16.msra.mxu0 %v1217
        %1255 = vmatprep.subr.bf16.mxu0 0
        %1256 = vmatpush1.bf16.msra.mxu0 %v1218
        %1257 = vmatprep.subr.bf16.mxu0 0
        %1258 = vmatpush1.bf16.msra.mxu0 %v1219
        %1259 = vmatprep.subr.bf16.mxu0 0
        %1260 = vmatpush1.bf16.msra.mxu0 %v1220
        %1261 = vmatprep.subr.bf16.mxu0 0
        %1262 = vmatpush1.bf16.msra.mxu0 %v1221
        %1263 = vmatprep.subr.bf16.mxu0 0
        %1264 = vmatpush1.bf16.msra.mxu0 %v1222
        %1265 = vmatprep.subr.bf16.mxu0 0
        %1266 = vmatpush1.bf16.msra.mxu0 %v1223
        %1267 = vmatprep.subr.bf16.mxu0 0
        %1268 = vmatpush1.bf16.msra.mxu0 %v1224
        %1269 = vmatprep.subr.bf16.mxu0 0
        %1270 = vmatpush1.bf16.msra.mxu0 %v1225
        %1271 = vmatprep.subr.bf16.mxu0 0
        %1272 = vmatpush1.bf16.msra.mxu0 %v1226
        %1273 = vmatprep.subr.bf16.mxu0 0
        %1274 = vmatpush1.bf16.msra.mxu0 %v1227
        %1275 = vmatprep.subr.bf16.mxu0 0
        %1276 = vmatpush1.bf16.msra.mxu0 %v1228
        %1277 = vmatprep.mubr.bf16.mxu0 %v1102
        %1278 = vmatmul.mubr.bf16.gmra.mrb[0].mxu0 %v1101
        %v1279 = vpop.f32.mrb[0].mxu0
        %v1280 = vadd.f32 0.0, %v1279
        %v1281 = vpop.f32.mrb[0].mxu0
        %v1282 = vpop.f32.mrb[0].mxu0
        %v1283 = vadd.f32 0.0, %v1282
        %v1284 = vpop.f32.mrb[0].mxu0
        %1285 = vmatprep.mubr.bf16.mxu0 %v1104
        %1286 = vmatmul.mubr.bf16.gmra.mrb[0].mxu0 %v1103
        %v1287 = vpop.f32.mrb[0].mxu0
        %v1288 = vadd.f32 0.0, %v1287
        %v1289 = vpop.f32.mrb[0].mxu0
        %v1290 = vpop.f32.mrb[0].mxu0
        %v1291 = vadd.f32 0.0, %v1290
        %v1292 = vpop.f32.mrb[0].mxu0
        %1293 = vmatprep.mubr.bf16.mxu0 %v1106
        %1294 = vmatmul.mubr.bf16.gmra.mrb[0].mxu0 %v1105
        %v1295 = vpop.f32.mrb[0].mxu0
        %v1296 = vadd.f32 0.0, %v1295
        %v1297 = vpop.f32.mrb[0].mxu0
        %v1298 = vpop.f32.mrb[0].mxu0
        %v1299 = vadd.f32 0.0, %v1298
        %v1300 = vpop.f32.mrb[0].mxu0
        %1301 = vmatprep.mubr.bf16.mxu0 %v1108
        %1302 = vmatmul.mubr.bf16.gmra.mrb[0].mxu0 %v1107
        %v1303 = vpop.f32.mrb[0].mxu0
        %v1304 = vadd.f32 0.0, %v1303
        %v1305 = vpop.f32.mrb[0].mxu0
        %v1306 = vpop.f32.mrb[0].mxu0
        %v1307 = vadd.f32 0.0, %v1306
        %v1308 = vpop.f32.mrb[0].mxu0
        %1309 = vmatprep.mubr.bf16.mxu0 %v1110
        %1310 = vmatmul.mubr.bf16.gmra.mrb[0].mxu0 %v1109
        %v1311 = vpop.f32.mrb[0].mxu0
        %v1312 = vadd.f32 0.0, %v1311
        %v1313 = vpop.f32.mrb[0].mxu0
        %v1314 = vpop.f32.mrb[0].mxu0
        %v1315 = vadd.f32 0.0, %v1314
        %v1316 = vpop.f32.mrb[0].mxu0
        %1317 = vmatprep.mubr.bf16.mxu0 %v1112
        %1318 = vmatmul.mubr.bf16.gmra.mrb[0].mxu0 %v1111
        %v1319 = vpop.f32.mrb[0].mxu0
        %v1320 = vadd.f32 0.0, %v1319
        %v1321 = vpop.f32.mrb[0].mxu0
        %v1322 = vpop.f32.mrb[0].mxu0
        %v1323 = vadd.f32 0.0, %v1322
        %v1324 = vpop.f32.mrb[0].mxu0
        %1325 = vmatprep.mubr.bf16.mxu0 %v1114
        %1326 = vmatmul.mubr.bf16.gmra.mrb[0].mxu0 %v1113
        %v1327 = vpop.f32.mrb[0].mxu0
        %v1328 = vadd.f32 0.0, %v1327
        %v1329 = vpop.f32.mrb[0].mxu0
        %v1330 = vpop.f32.mrb[0].mxu0
        %v1331 = vadd.f32 0.0, %v1330
        %v1332 = vpop.f32.mrb[0].mxu0
        %1333 = vmatprep.mubr.bf16.mxu0 %v1116
        %1334 = vmatmul.mubr.bf16.gmra.mrb[0].mxu0 %v1115
        %v1335 = vpop.f32.mrb[0].mxu0
        %v1336 = vadd.f32 0.0, %v1335
        %v1337 = vpop.f32.mrb[0].mxu0
        %v1338 = vpop.f32.mrb[0].mxu0
        %v1339 = vadd.f32 0.0, %v1338
        %v1340 = vpop.f32.mrb[0].mxu0
        %1341 = vdwg.mxu0
        %v1342 = vadd.f32 %v1085, %v1280
        %v1343 = vadd.f32 %v1086, %v1283
        %v1344 = vadd.f32 %v1087, %v1288
        %v1345 = vadd.f32 %v1088, %v1291
        %v1346 = vadd.f32 %v1089, %v1296
        %v1347 = vadd.f32 %v1090, %v1299
        %v1348 = vadd.f32 %v1091, %v1304
        %v1349 = vadd.f32 %v1092, %v1307
        %v1350 = vadd.f32 %v1093, %v1312
        %v1351 = vadd.f32 %v1094, %v1315
        %v1352 = vadd.f32 %v1095, %v1320
        %v1353 = vadd.f32 %v1096, %v1323
        %v1354 = vadd.f32 %v1097, %v1328
        %v1355 = vadd.f32 %v1098, %v1331
        %v1356 = vadd.f32 %v1099, %v1336
        %v1357 = vadd.f32 %v1100, %v1339
        %1358 = vst [vmem:[#allocation10] sm:$0xff] %v1342
        %1359 = vst [vmem:[#allocation10 + $0x8] sm:$0xff] %v1343
        %1360 = vst [vmem:[#allocation10 + $0x10] sm:$0xff] %v1344
        %1361 = vst [vmem:[#allocation10 + $0x18] sm:$0xff] %v1345
        %1362 = vst [vmem:[#allocation10 + $0x20] sm:$0xff] %v1346
        %1363 = vst [vmem:[#allocation10 + $0x28] sm:$0xff] %v1347
        %1364 = vst [vmem:[#allocation10 + $0x30] sm:$0xff] %v1348
        %1365 = vst [vmem:[#allocation10 + $0x38] sm:$0xff] %v1349
        %1366 = vst [vmem:[#allocation10 + $0x40] sm:$0xff] %v1350
        %1367 = vst [vmem:[#allocation10 + $0x48] sm:$0xff] %v1351
        %1368 = vst [vmem:[#allocation10 + $0x50] sm:$0xff] %v1352
        %1369 = vst [vmem:[#allocation10 + $0x58] sm:$0xff] %v1353
        %1370 = vst [vmem:[#allocation10 + $0x60] sm:$0xff] %v1354
        %1371 = vst [vmem:[#allocation10 + $0x68] sm:$0xff] %v1355
        %1372 = vst [vmem:[#allocation10 + $0x70] sm:$0xff] %v1356
        %1373 = vst [vmem:[#allocation10 + $0x78] sm:$0xff] %v1357
        // Predicated region
        $region57: #{tpu_custom_call.1} parent=35 // pred_check
          %p1374 = pneg %p157
        $region58: #{tpu_custom_call.1} parent=35 // pred_check_branch
          %1376 = sbr.rel (%p1374) target = $region60
        $region59: #{tpu_custom_call.1} parent=35 // pred_region
          %s1377 = smul.u32 16, %s27
          %s1379 = ssub.s32 2048, 2048
          %1380 = vsyncadd [#allocation4], %s1379
          %s1381 = smul.addr %s1377, 128
          %s1382 = scalar_lea.hbm %s4, %s1381
          %s1383 = sshll.u32 [#allocation10], 4
          %s1384 = int_to_ptr.vmem [resolvable:$true] %s1383
          %1389 = dma.vmem_to_hbm [thread:$0]  %s1384, 2048, %s1382, [#allocation4], 128, 128, 8
        $region60: #{tpu_custom_call.1} parent=35 // pred_fallthru
          _
        // Predicated region
        $region61: #{tpu_custom_call.1} parent=35 // pred_check
          %p1390 = pneg %p157
        $region62: #{tpu_custom_call.1} parent=35 // pred_check_branch
          %1392 = sbr.rel (%p1390) target = $region64
        $region63: #{tpu_custom_call.1} parent=35 // pred_region
          %1393 = dma.done [#allocation4], 2048
        $region64: #{tpu_custom_call.1} parent=35 // pred_fallthru
          _
      $region36: #{tpu_custom_call.1} parent=5 // pred_fallthru
        _
      %p1394 = scmp.le.s32.totalorder 2, %s18
      // Predicated region
      $region65: #{tpu_custom_call.1} parent=5 // pred_check
        %p1395 = pneg %p1394
      $region66: #{tpu_custom_call.1} parent=5 // pred_check_branch
        %1397 = sbr.rel (%p1395) target = $region68
      $region67: #{tpu_custom_call.1} parent=5 // pred_region
        %s1398 = ssub.s32 %s18, 2
      $region68: #{tpu_custom_call.1} parent=5 // pred_fallthru
        _
    $region6: #{tpu_custom_call.1} parent=1 // loop_footer
      %s22 = sadd.s32 1, %s18
    $region7: #{tpu_custom_call.1} parent=1 // loop_footer_branch
      %17 = sbr.rel target = $region3
    $region8: #{tpu_custom_call.1} parent=1 // loop_exit
      _
    %1399 = vsyncpa [#allocation3], 1
    %s1400 = scalar_lea.sflag [#allocation3], 1
    %1401 = vsyncpa %s1400, 1
    %1402 = vsyncpa [#allocation6], 1
    %s1403 = scalar_lea.sflag [#allocation6], 1
    %1404 = vsyncpa %s1403, 1
    %1405 = vsyncpa [#allocation9], 1
    %s1406 = scalar_lea.sflag [#allocation9], 1
    %1407 = vsyncpa %s1406, 1
    %1408 = vsyncpa [#allocation4], 1
    %s1409 = scalar_lea.sflag [#allocation4], 1
    %1410 = vsyncpa %s1409, 1

</llo_original>
